<compile_context>
chip_gen: v5e
topology: v5e:2x2
jax: 0.10.0
libtpu: 0.0.40
codegen_flags: <defaults>
</compile_context>

<pallas_src>
import functools

import jax
import jax.numpy as jnp
from jax.experimental import pallas as pl
from jax.experimental.pallas import tpu as pltpu


def lstm_forecast_kernel(x_ref, wih_ref, whh_ref, b_ref, wlin_ref, blin_ref,
                         out_ref, *, batch_pad, seq_len):
    """Single-layer LSTM over `seq_len` steps + Linear on the last hidden state.

    x_ref    : (seq_len*batch_pad, I)  time-major flattened input (row = t*B + b)
    wih_ref  : (I, 4H)                 W_ih^T  (g-gate columns pre-scaled by 2)
    whh_ref  : (H, 4H)                 W_hh^T  (g-gate columns pre-scaled by 2)
    b_ref    : (1, 4H)                 b_ih + b_hh (g-gate slice pre-scaled by 2)
    wlin_ref : (H, O_pad)              Linear weight^T, lane-padded
    blin_ref : (1, O_pad)              Linear bias, lane-padded
    out_ref  : (batch_pad, O_pad)
    """
    B, T = batch_pad, seq_len
    H = whh_ref.shape[0]

    # ---- Hoisted input projection: one MXU op for all (t, b) pairs, fused
    # with the bias; no dependence on the recurrence.
    xw_flat = (jnp.dot(x_ref[...], wih_ref[...],
                       preferred_element_type=jnp.float32)
               + b_ref[...])                                    # (T*B, 4H)

    whh = whh_ref[...]                                          # (H, 4H)
    h = jnp.zeros((B, H), jnp.float32)
    c = jnp.zeros((B, H), jnp.float32)

    # ---- Fully-unrolled recurrence: only h @ W_hh^T, one sigmoid, one tanh(c)
    # and a few VPU ops stay on the serial critical path per step.
    for t in range(T):
        # Contiguous, 8-sublane-aligned static slice of the precomputed projection.
        xw_t = xw_flat[t * B:(t + 1) * B, :]                    # (B, 4H)
        gates = xw_t + jnp.dot(h, whh, preferred_element_type=jnp.float32)
        # Single full-width EUP pass; g gate via tanh(z) = 2*sigmoid(2z) - 1
        # (the factor 2 on z is baked into the weights/bias).
        sig = jax.nn.sigmoid(gates)                             # (B, 4H)
        i_g = sig[:, 0 * H:1 * H]
        f_g = sig[:, 1 * H:2 * H]
        g_g = 2.0 * sig[:, 2 * H:3 * H] - 1.0
        o_g = sig[:, 3 * H:4 * H]
        c = f_g * c + i_g * g_g
        h = o_g * jnp.tanh(c)

    # ---- Final Linear on h_T. O is pre-padded to a full 128-lane tile and
    # batch_pad is a multiple of 8, so the matmul and store are unmasked.
    out_ref[...] = (jnp.dot(h, wlin_ref[...], preferred_element_type=jnp.float32)
                    + blin_ref[...]).astype(out_ref.dtype)


def lstm_forecast(x_bti, w_ih_t, w_hh_t, bias, w_lin_pad, b_lin_pad, out_size):
    """x_bti: (B, T, I) batch-first, like the PyTorch module. Returns (B, out_size)."""
    B, T, I = x_bti.shape
    O_pad = w_lin_pad.shape[1]
    # Pad batch to a full 8-sublane tile and go time-major.  x is only a few
    # hundred bytes, so this host-side relayout is negligible and buys
    # contiguous, aligned per-step slices inside the kernel.
    B_pad = max(8, ((B + 7) // 8) * 8)
    x_tbi = jnp.transpose(x_bti, (1, 0, 2))                      # (T, B, I)
    x_tbi = jnp.pad(x_tbi, ((0, 0), (0, B_pad - B), (0, 0)))     # (T, B_pad, I)
    x2d = x_tbi.reshape(T * B_pad, I)

    vmem = pl.BlockSpec(memory_space=pltpu.MemorySpace.VMEM)
    out_pad = pl.pallas_call(
        functools.partial(lstm_forecast_kernel, batch_pad=B_pad, seq_len=T),
        out_shape=jax.ShapeDtypeStruct((B_pad, O_pad), jnp.float32),
        in_specs=[vmem] * 6,
        out_specs=vmem,
    )(x2d, w_ih_t, w_hh_t, bias, w_lin_pad, b_lin_pad)
    return out_pad[:B, :out_size]


def reference(x_bti, w_ih_t, w_hh_t, bias, w_lin_t, b_lin):
    """Pure-JAX reference replicating nn.LSTM (batch_first) + nn.Linear."""
    B, T, I = x_bti.shape
    H = w_hh_t.shape[0]
    h = jnp.zeros((B, H), jnp.float32)
    c = jnp.zeros((B, H), jnp.float32)
    for t in range(T):
        gates = x_bti[:, t, :] @ w_ih_t + h @ w_hh_t + bias
        i_g = jax.nn.sigmoid(gates[:, 0 * H:1 * H])
        f_g = jax.nn.sigmoid(gates[:, 1 * H:2 * H])
        g_g = jnp.tanh(gates[:, 2 * H:3 * H])
        o_g = jax.nn.sigmoid(gates[:, 3 * H:4 * H])
        c = f_g * c + i_g * g_g
        h = o_g * jnp.tanh(c)
    return h @ w_lin_t + b_lin


if __name__ == "__main__":
    PRED_LEN = 10
    TARGETS = 4                       # ['temperature', 'humidity', 'mq', 'dust']
    INPUT_SIZE = 4
    HIDDEN_SIZE = 32
    OUTPUT_SIZE = PRED_LEN * TARGETS  # 40
    BATCH = 2
    SEQ = 8

    key = jax.random.PRNGKey(0)
    kx, k1, k2, k3, k4, k5, k6 = jax.random.split(key, 7)

    # Deterministic parameter init, mimicking PyTorch's U(-1/sqrt(H), 1/sqrt(H)).
    s = 1.0 / jnp.sqrt(jnp.float32(HIDDEN_SIZE))
    w_ih = jax.random.uniform(k1, (4 * HIDDEN_SIZE, INPUT_SIZE), jnp.float32, -s, s)
    w_hh = jax.random.uniform(k2, (4 * HIDDEN_SIZE, HIDDEN_SIZE), jnp.float32, -s, s)
    b_ih = jax.random.uniform(k3, (4 * HIDDEN_SIZE,), jnp.float32, -s, s)
    b_hh = jax.random.uniform(k4, (4 * HIDDEN_SIZE,), jnp.float32, -s, s)
    w_lin = jax.random.uniform(k5, (OUTPUT_SIZE, HIDDEN_SIZE), jnp.float32, -s, s)
    b_lin = jax.random.uniform(k6, (OUTPUT_SIZE,), jnp.float32, -s, s)

    # Input: (batch, seq, input_size), same convention as the PyTorch module.
    x = jax.random.normal(kx, (BATCH, SEQ, INPUT_SIZE), jnp.float32)

    # ---- One-time parameter re-layout (done at model-load time) -------------
    H = HIDDEN_SIZE
    w_ih_t = w_ih.T                                      # (I, 4H)
    w_hh_t = w_hh.T                                      # (H, 4H)
    bias = (b_ih + b_hh).reshape(1, 4 * H)               # (1, 4H)

    # Pre-scale the g-gate columns by 2 so the kernel can use a single sigmoid
    # pass and recover tanh(z) as 2*sigmoid(2z) - 1.
    g_scale = jnp.ones((4 * H,), jnp.float32).at[2 * H:3 * H].set(2.0)
    w_ih_k = w_ih_t * g_scale                            # scales columns 2H:3H
    w_hh_k = w_hh_t * g_scale
    bias_k = bias * g_scale

    w_lin_t = w_lin.T                                    # (H, O)
    b_lin2 = b_lin.reshape(1, OUTPUT_SIZE)               # (1, O)
    # Lane-pad the Linear params to a full 128-lane tile for an unmasked store.
    O_PAD = ((OUTPUT_SIZE + 127) // 128) * 128           # 128
    w_lin_pad = jnp.zeros((HIDDEN_SIZE, O_PAD), jnp.float32).at[:, :OUTPUT_SIZE].set(w_lin_t)
    b_lin_pad = jnp.zeros((1, O_PAD), jnp.float32).at[:, :OUTPUT_SIZE].set(b_lin2)

    out = lstm_forecast(x, w_ih_k, w_hh_k, bias_k, w_lin_pad, b_lin_pad, OUTPUT_SIZE)
    out = jax.block_until_ready(out)

    ref = reference(x, w_ih_t, w_hh_t, bias, w_lin_t, b_lin2)
    assert out.shape == (BATCH, OUTPUT_SIZE)
    assert jnp.allclose(out, ref, atol=1e-5, rtol=1e-5), "mismatch vs reference"

    print("KERNEL_OK")
</pallas_src>

<mosaic_0001>
module attributes {stable_mosaic.version = 11 : i64} {
  func.func @lstm_forecast_kernel(%arg0: memref<64x4xf32, #tpu.memory_space<vmem>>, %arg1: memref<4x128xf32, #tpu.memory_space<vmem>>, %arg2: memref<32x128xf32, #tpu.memory_space<vmem>>, %arg3: memref<1x128xf32, #tpu.memory_space<vmem>>, %arg4: memref<32x128xf32, #tpu.memory_space<vmem>>, %arg5: memref<1x128xf32, #tpu.memory_space<vmem>>, %arg6: memref<8x128xf32, #tpu.memory_space<vmem>>) attributes {dimension_semantics = [], scalar_prefetch = 0 : i64, scratch_operands = 0 : i64, tpu.core_type = #tpu.core_type<tc>} {
    %c0 = arith.constant 0 : index
    %c0_0 = arith.constant 0 : index
    %0 = vector.load %arg0[%c0, %c0_0] : memref<64x4xf32, #tpu.memory_space<vmem>>, vector<64x4xf32>
    %c0_1 = arith.constant 0 : index
    %c0_2 = arith.constant 0 : index
    %1 = vector.load %arg1[%c0_1, %c0_2] : memref<4x128xf32, #tpu.memory_space<vmem>>, vector<4x128xf32>
    %cst = arith.constant dense<0.000000e+00> : vector<64x128xf32>
    %2 = tpu.matmul %0, %1, %cst {dimension_numbers = #tpu.dot_dimension_numbers<[1], [0], [0], [1], [0, 0, 1, 1], [], []>} : vector<64x4xf32>, vector<4x128xf32>, vector<64x128xf32> -> vector<64x128xf32>
    %c0_3 = arith.constant 0 : index
    %c0_4 = arith.constant 0 : index
    %3 = vector.load %arg3[%c0_3, %c0_4] : memref<1x128xf32, #tpu.memory_space<vmem>>, vector<1x128xf32>
    %4 = vector.broadcast %3 : vector<1x128xf32> to vector<64x128xf32>
    %5 = arith.addf %2, %4 : vector<64x128xf32>
    %c0_5 = arith.constant 0 : index
    %c0_6 = arith.constant 0 : index
    %6 = vector.load %arg2[%c0_5, %c0_6] : memref<32x128xf32, #tpu.memory_space<vmem>>, vector<32x128xf32>
    %cst_7 = arith.constant 0.000000e+00 : f32
    %7 = vector.broadcast %cst_7 : f32 to vector<8x32xf32>
    %cst_8 = arith.constant 0.000000e+00 : f32
    %8 = vector.broadcast %cst_8 : f32 to vector<8x32xf32>
    %9 = vector.extract_strided_slice %5 {offsets = [0, 0], sizes = [8, 128], strides = [1, 1]} : vector<64x128xf32> to vector<8x128xf32>
    %cst_9 = arith.constant dense<0.000000e+00> : vector<8x128xf32>
    %10 = tpu.matmul %7, %6, %cst_9 {dimension_numbers = #tpu.dot_dimension_numbers<[1], [0], [0], [1], [0, 0, 1, 1], [], []>} : vector<8x32xf32>, vector<32x128xf32>, vector<8x128xf32> -> vector<8x128xf32>
    %11 = arith.addf %9, %10 : vector<8x128xf32>
    %12 = arith.negf %11 : vector<8x128xf32>
    %13 = math.exp %12 : vector<8x128xf32>
    %cst_10 = arith.constant 1.000000e+00 : f32
    %14 = vector.broadcast %cst_10 : f32 to vector<8x128xf32>
    %15 = arith.addf %14, %13 : vector<8x128xf32>
    %16 = arith.divf %14, %15 : vector<8x128xf32>
    %17 = vector.extract_strided_slice %16 {offsets = [0, 0], sizes = [8, 32], strides = [1, 1]} : vector<8x128xf32> to vector<8x32xf32>
    %18 = vector.extract_strided_slice %16 {offsets = [0, 32], sizes = [8, 32], strides = [1, 1]} : vector<8x128xf32> to vector<8x32xf32>
    %19 = vector.extract_strided_slice %16 {offsets = [0, 64], sizes = [8, 32], strides = [1, 1]} : vector<8x128xf32> to vector<8x32xf32>
    %cst_11 = arith.constant 2.000000e+00 : f32
    %20 = vector.broadcast %cst_11 : f32 to vector<8x32xf32>
    %21 = arith.mulf %20, %19 : vector<8x32xf32>
    %cst_12 = arith.constant 1.000000e+00 : f32
    %22 = vector.broadcast %cst_12 : f32 to vector<8x32xf32>
    %23 = arith.subf %21, %22 : vector<8x32xf32>
    %24 = vector.extract_strided_slice %16 {offsets = [0, 96], sizes = [8, 32], strides = [1, 1]} : vector<8x128xf32> to vector<8x32xf32>
    %25 = arith.mulf %18, %8 : vector<8x32xf32>
    %26 = arith.mulf %17, %23 : vector<8x32xf32>
    %27 = arith.addf %25, %26 : vector<8x32xf32>
    %28 = math.tanh %27 : vector<8x32xf32>
    %29 = arith.mulf %24, %28 : vector<8x32xf32>
    %30 = vector.extract_strided_slice %5 {offsets = [8, 0], sizes = [8, 128], strides = [1, 1]} : vector<64x128xf32> to vector<8x128xf32>
    %cst_13 = arith.constant dense<0.000000e+00> : vector<8x128xf32>
    %31 = tpu.matmul %29, %6, %cst_13 {dimension_numbers = #tpu.dot_dimension_numbers<[1], [0], [0], [1], [0, 0, 1, 1], [], []>} : vector<8x32xf32>, vector<32x128xf32>, vector<8x128xf32> -> vector<8x128xf32>
    %32 = arith.addf %30, %31 : vector<8x128xf32>
    %33 = arith.negf %32 : vector<8x128xf32>
    %34 = math.exp %33 : vector<8x128xf32>
    %cst_14 = arith.constant 1.000000e+00 : f32
    %35 = vector.broadcast %cst_14 : f32 to vector<8x128xf32>
    %36 = arith.addf %35, %34 : vector<8x128xf32>
    %37 = arith.divf %35, %36 : vector<8x128xf32>
    %38 = vector.extract_strided_slice %37 {offsets = [0, 0], sizes = [8, 32], strides = [1, 1]} : vector<8x128xf32> to vector<8x32xf32>
    %39 = vector.extract_strided_slice %37 {offsets = [0, 32], sizes = [8, 32], strides = [1, 1]} : vector<8x128xf32> to vector<8x32xf32>
    %40 = vector.extract_strided_slice %37 {offsets = [0, 64], sizes = [8, 32], strides = [1, 1]} : vector<8x128xf32> to vector<8x32xf32>
    %cst_15 = arith.constant 2.000000e+00 : f32
    %41 = vector.broadcast %cst_15 : f32 to vector<8x32xf32>
    %42 = arith.mulf %41, %40 : vector<8x32xf32>
    %cst_16 = arith.constant 1.000000e+00 : f32
    %43 = vector.broadcast %cst_16 : f32 to vector<8x32xf32>
    %44 = arith.subf %42, %43 : vector<8x32xf32>
    %45 = vector.extract_strided_slice %37 {offsets = [0, 96], sizes = [8, 32], strides = [1, 1]} : vector<8x128xf32> to vector<8x32xf32>
    %46 = arith.mulf %39, %27 : vector<8x32xf32>
    %47 = arith.mulf %38, %44 : vector<8x32xf32>
    %48 = arith.addf %46, %47 : vector<8x32xf32>
    %49 = math.tanh %48 : vector<8x32xf32>
    %50 = arith.mulf %45, %49 : vector<8x32xf32>
    %51 = vector.extract_strided_slice %5 {offsets = [16, 0], sizes = [8, 128], strides = [1, 1]} : vector<64x128xf32> to vector<8x128xf32>
    %cst_17 = arith.constant dense<0.000000e+00> : vector<8x128xf32>
    %52 = tpu.matmul %50, %6, %cst_17 {dimension_numbers = #tpu.dot_dimension_numbers<[1], [0], [0], [1], [0, 0, 1, 1], [], []>} : vector<8x32xf32>, vector<32x128xf32>, vector<8x128xf32> -> vector<8x128xf32>
    %53 = arith.addf %51, %52 : vector<8x128xf32>
    %54 = arith.negf %53 : vector<8x128xf32>
    %55 = math.exp %54 : vector<8x128xf32>
    %cst_18 = arith.constant 1.000000e+00 : f32
    %56 = vector.broadcast %cst_18 : f32 to vector<8x128xf32>
    %57 = arith.addf %56, %55 : vector<8x128xf32>
    %58 = arith.divf %56, %57 : vector<8x128xf32>
    %59 = vector.extract_strided_slice %58 {offsets = [0, 0], sizes = [8, 32], strides = [1, 1]} : vector<8x128xf32> to vector<8x32xf32>
    %60 = vector.extract_strided_slice %58 {offsets = [0, 32], sizes = [8, 32], strides = [1, 1]} : vector<8x128xf32> to vector<8x32xf32>
    %61 = vector.extract_strided_slice %58 {offsets = [0, 64], sizes = [8, 32], strides = [1, 1]} : vector<8x128xf32> to vector<8x32xf32>
    %cst_19 = arith.constant 2.000000e+00 : f32
    %62 = vector.broadcast %cst_19 : f32 to vector<8x32xf32>
    %63 = arith.mulf %62, %61 : vector<8x32xf32>
    %cst_20 = arith.constant 1.000000e+00 : f32
    %64 = vector.broadcast %cst_20 : f32 to vector<8x32xf32>
    %65 = arith.subf %63, %64 : vector<8x32xf32>
    %66 = vector.extract_strided_slice %58 {offsets = [0, 96], sizes = [8, 32], strides = [1, 1]} : vector<8x128xf32> to vector<8x32xf32>
    %67 = arith.mulf %60, %48 : vector<8x32xf32>
    %68 = arith.mulf %59, %65 : vector<8x32xf32>
    %69 = arith.addf %67, %68 : vector<8x32xf32>
    %70 = math.tanh %69 : vector<8x32xf32>
    %71 = arith.mulf %66, %70 : vector<8x32xf32>
    %72 = vector.extract_strided_slice %5 {offsets = [24, 0], sizes = [8, 128], strides = [1, 1]} : vector<64x128xf32> to vector<8x128xf32>
    %cst_21 = arith.constant dense<0.000000e+00> : vector<8x128xf32>
    %73 = tpu.matmul %71, %6, %cst_21 {dimension_numbers = #tpu.dot_dimension_numbers<[1], [0], [0], [1], [0, 0, 1, 1], [], []>} : vector<8x32xf32>, vector<32x128xf32>, vector<8x128xf32> -> vector<8x128xf32>
    %74 = arith.addf %72, %73 : vector<8x128xf32>
    %75 = arith.negf %74 : vector<8x128xf32>
    %76 = math.exp %75 : vector<8x128xf32>
    %cst_22 = arith.constant 1.000000e+00 : f32
    %77 = vector.broadcast %cst_22 : f32 to vector<8x128xf32>
    %78 = arith.addf %77, %76 : vector<8x128xf32>
    %79 = arith.divf %77, %78 : vector<8x128xf32>
    %80 = vector.extract_strided_slice %79 {offsets = [0, 0], sizes = [8, 32], strides = [1, 1]} : vector<8x128xf32> to vector<8x32xf32>
    %81 = vector.extract_strided_slice %79 {offsets = [0, 32], sizes = [8, 32], strides = [1, 1]} : vector<8x128xf32> to vector<8x32xf32>
    %82 = vector.extract_strided_slice %79 {offsets = [0, 64], sizes = [8, 32], strides = [1, 1]} : vector<8x128xf32> to vector<8x32xf32>
    %cst_23 = arith.constant 2.000000e+00 : f32
    %83 = vector.broadcast %cst_23 : f32 to vector<8x32xf32>
    %84 = arith.mulf %83, %82 : vector<8x32xf32>
    %cst_24 = arith.constant 1.000000e+00 : f32
    %85 = vector.broadcast %cst_24 : f32 to vector<8x32xf32>
    %86 = arith.subf %84, %85 : vector<8x32xf32>
    %87 = vector.extract_strided_slice %79 {offsets = [0, 96], sizes = [8, 32], strides = [1, 1]} : vector<8x128xf32> to vector<8x32xf32>
    %88 = arith.mulf %81, %69 : vector<8x32xf32>
    %89 = arith.mulf %80, %86 : vector<8x32xf32>
    %90 = arith.addf %88, %89 : vector<8x32xf32>
    %91 = math.tanh %90 : vector<8x32xf32>
    %92 = arith.mulf %87, %91 : vector<8x32xf32>
    %93 = vector.extract_strided_slice %5 {offsets = [32, 0], sizes = [8, 128], strides = [1, 1]} : vector<64x128xf32> to vector<8x128xf32>
    %cst_25 = arith.constant dense<0.000000e+00> : vector<8x128xf32>
    %94 = tpu.matmul %92, %6, %cst_25 {dimension_numbers = #tpu.dot_dimension_numbers<[1], [0], [0], [1], [0, 0, 1, 1], [], []>} : vector<8x32xf32>, vector<32x128xf32>, vector<8x128xf32> -> vector<8x128xf32>
    %95 = arith.addf %93, %94 : vector<8x128xf32>
    %96 = arith.negf %95 : vector<8x128xf32>
    %97 = math.exp %96 : vector<8x128xf32>
    %cst_26 = arith.constant 1.000000e+00 : f32
    %98 = vector.broadcast %cst_26 : f32 to vector<8x128xf32>
    %99 = arith.addf %98, %97 : vector<8x128xf32>
    %100 = arith.divf %98, %99 : vector<8x128xf32>
    %101 = vector.extract_strided_slice %100 {offsets = [0, 0], sizes = [8, 32], strides = [1, 1]} : vector<8x128xf32> to vector<8x32xf32>
    %102 = vector.extract_strided_slice %100 {offsets = [0, 32], sizes = [8, 32], strides = [1, 1]} : vector<8x128xf32> to vector<8x32xf32>
    %103 = vector.extract_strided_slice %100 {offsets = [0, 64], sizes = [8, 32], strides = [1, 1]} : vector<8x128xf32> to vector<8x32xf32>
    %cst_27 = arith.constant 2.000000e+00 : f32
    %104 = vector.broadcast %cst_27 : f32 to vector<8x32xf32>
    %105 = arith.mulf %104, %103 : vector<8x32xf32>
    %cst_28 = arith.constant 1.000000e+00 : f32
    %106 = vector.broadcast %cst_28 : f32 to vector<8x32xf32>
    %107 = arith.subf %105, %106 : vector<8x32xf32>
    %108 = vector.extract_strided_slice %100 {offsets = [0, 96], sizes = [8, 32], strides = [1, 1]} : vector<8x128xf32> to vector<8x32xf32>
    %109 = arith.mulf %102, %90 : vector<8x32xf32>
    %110 = arith.mulf %101, %107 : vector<8x32xf32>
    %111 = arith.addf %109, %110 : vector<8x32xf32>
    %112 = math.tanh %111 : vector<8x32xf32>
    %113 = arith.mulf %108, %112 : vector<8x32xf32>
    %114 = vector.extract_strided_slice %5 {offsets = [40, 0], sizes = [8, 128], strides = [1, 1]} : vector<64x128xf32> to vector<8x128xf32>
    %cst_29 = arith.constant dense<0.000000e+00> : vector<8x128xf32>
    %115 = tpu.matmul %113, %6, %cst_29 {dimension_numbers = #tpu.dot_dimension_numbers<[1], [0], [0], [1], [0, 0, 1, 1], [], []>} : vector<8x32xf32>, vector<32x128xf32>, vector<8x128xf32> -> vector<8x128xf32>
    %116 = arith.addf %114, %115 : vector<8x128xf32>
    %117 = arith.negf %116 : vector<8x128xf32>
    %118 = math.exp %117 : vector<8x128xf32>
    %cst_30 = arith.constant 1.000000e+00 : f32
    %119 = vector.broadcast %cst_30 : f32 to vector<8x128xf32>
    %120 = arith.addf %119, %118 : vector<8x128xf32>
    %121 = arith.divf %119, %120 : vector<8x128xf32>
    %122 = vector.extract_strided_slice %121 {offsets = [0, 0], sizes = [8, 32], strides = [1, 1]} : vector<8x128xf32> to vector<8x32xf32>
    %123 = vector.extract_strided_slice %121 {offsets = [0, 32], sizes = [8, 32], strides = [1, 1]} : vector<8x128xf32> to vector<8x32xf32>
    %124 = vector.extract_strided_slice %121 {offsets = [0, 64], sizes = [8, 32], strides = [1, 1]} : vector<8x128xf32> to vector<8x32xf32>
    %cst_31 = arith.constant 2.000000e+00 : f32
    %125 = vector.broadcast %cst_31 : f32 to vector<8x32xf32>
    %126 = arith.mulf %125, %124 : vector<8x32xf32>
    %cst_32 = arith.constant 1.000000e+00 : f32
    %127 = vector.broadcast %cst_32 : f32 to vector<8x32xf32>
    %128 = arith.subf %126, %127 : vector<8x32xf32>
    %129 = vector.extract_strided_slice %121 {offsets = [0, 96], sizes = [8, 32], strides = [1, 1]} : vector<8x128xf32> to vector<8x32xf32>
    %130 = arith.mulf %123, %111 : vector<8x32xf32>
    %131 = arith.mulf %122, %128 : vector<8x32xf32>
    %132 = arith.addf %130, %131 : vector<8x32xf32>
    %133 = math.tanh %132 : vector<8x32xf32>
    %134 = arith.mulf %129, %133 : vector<8x32xf32>
    %135 = vector.extract_strided_slice %5 {offsets = [48, 0], sizes = [8, 128], strides = [1, 1]} : vector<64x128xf32> to vector<8x128xf32>
    %cst_33 = arith.constant dense<0.000000e+00> : vector<8x128xf32>
    %136 = tpu.matmul %134, %6, %cst_33 {dimension_numbers = #tpu.dot_dimension_numbers<[1], [0], [0], [1], [0, 0, 1, 1], [], []>} : vector<8x32xf32>, vector<32x128xf32>, vector<8x128xf32> -> vector<8x128xf32>
    %137 = arith.addf %135, %136 : vector<8x128xf32>
    %138 = arith.negf %137 : vector<8x128xf32>
    %139 = math.exp %138 : vector<8x128xf32>
    %cst_34 = arith.constant 1.000000e+00 : f32
    %140 = vector.broadcast %cst_34 : f32 to vector<8x128xf32>
    %141 = arith.addf %140, %139 : vector<8x128xf32>
    %142 = arith.divf %140, %141 : vector<8x128xf32>
    %143 = vector.extract_strided_slice %142 {offsets = [0, 0], sizes = [8, 32], strides = [1, 1]} : vector<8x128xf32> to vector<8x32xf32>
    %144 = vector.extract_strided_slice %142 {offsets = [0, 32], sizes = [8, 32], strides = [1, 1]} : vector<8x128xf32> to vector<8x32xf32>
    %145 = vector.extract_strided_slice %142 {offsets = [0, 64], sizes = [8, 32], strides = [1, 1]} : vector<8x128xf32> to vector<8x32xf32>
    %cst_35 = arith.constant 2.000000e+00 : f32
    %146 = vector.broadcast %cst_35 : f32 to vector<8x32xf32>
    %147 = arith.mulf %146, %145 : vector<8x32xf32>
    %cst_36 = arith.constant 1.000000e+00 : f32
    %148 = vector.broadcast %cst_36 : f32 to vector<8x32xf32>
    %149 = arith.subf %147, %148 : vector<8x32xf32>
    %150 = vector.extract_strided_slice %142 {offsets = [0, 96], sizes = [8, 32], strides = [1, 1]} : vector<8x128xf32> to vector<8x32xf32>
    %151 = arith.mulf %144, %132 : vector<8x32xf32>
    %152 = arith.mulf %143, %149 : vector<8x32xf32>
    %153 = arith.addf %151, %152 : vector<8x32xf32>
    %154 = math.tanh %153 : vector<8x32xf32>
    %155 = arith.mulf %150, %154 : vector<8x32xf32>
    %156 = vector.extract_strided_slice %5 {offsets = [56, 0], sizes = [8, 128], strides = [1, 1]} : vector<64x128xf32> to vector<8x128xf32>
    %cst_37 = arith.constant dense<0.000000e+00> : vector<8x128xf32>
    %157 = tpu.matmul %155, %6, %cst_37 {dimension_numbers = #tpu.dot_dimension_numbers<[1], [0], [0], [1], [0, 0, 1, 1], [], []>} : vector<8x32xf32>, vector<32x128xf32>, vector<8x128xf32> -> vector<8x128xf32>
    %158 = arith.addf %156, %157 : vector<8x128xf32>
    %159 = arith.negf %158 : vector<8x128xf32>
    %160 = math.exp %159 : vector<8x128xf32>
    %cst_38 = arith.constant 1.000000e+00 : f32
    %161 = vector.broadcast %cst_38 : f32 to vector<8x128xf32>
    %162 = arith.addf %161, %160 : vector<8x128xf32>
    %163 = arith.divf %161, %162 : vector<8x128xf32>
    %164 = vector.extract_strided_slice %163 {offsets = [0, 0], sizes = [8, 32], strides = [1, 1]} : vector<8x128xf32> to vector<8x32xf32>
    %165 = vector.extract_strided_slice %163 {offsets = [0, 32], sizes = [8, 32], strides = [1, 1]} : vector<8x128xf32> to vector<8x32xf32>
    %166 = vector.extract_strided_slice %163 {offsets = [0, 64], sizes = [8, 32], strides = [1, 1]} : vector<8x128xf32> to vector<8x32xf32>
    %cst_39 = arith.constant 2.000000e+00 : f32
    %167 = vector.broadcast %cst_39 : f32 to vector<8x32xf32>
    %168 = arith.mulf %167, %166 : vector<8x32xf32>
    %cst_40 = arith.constant 1.000000e+00 : f32
    %169 = vector.broadcast %cst_40 : f32 to vector<8x32xf32>
    %170 = arith.subf %168, %169 : vector<8x32xf32>
    %171 = vector.extract_strided_slice %163 {offsets = [0, 96], sizes = [8, 32], strides = [1, 1]} : vector<8x128xf32> to vector<8x32xf32>
    %172 = arith.mulf %165, %153 : vector<8x32xf32>
    %173 = arith.mulf %164, %170 : vector<8x32xf32>
    %174 = arith.addf %172, %173 : vector<8x32xf32>
    %175 = math.tanh %174 : vector<8x32xf32>
    %176 = arith.mulf %171, %175 : vector<8x32xf32>
    %c0_41 = arith.constant 0 : index
    %c0_42 = arith.constant 0 : index
    %177 = vector.load %arg4[%c0_41, %c0_42] : memref<32x128xf32, #tpu.memory_space<vmem>>, vector<32x128xf32>
    %cst_43 = arith.constant dense<0.000000e+00> : vector<8x128xf32>
    %178 = tpu.matmul %176, %177, %cst_43 {dimension_numbers = #tpu.dot_dimension_numbers<[1], [0], [0], [1], [0, 0, 1, 1], [], []>} : vector<8x32xf32>, vector<32x128xf32>, vector<8x128xf32> -> vector<8x128xf32>
    %c0_44 = arith.constant 0 : index
    %c0_45 = arith.constant 0 : index
    %179 = vector.load %arg5[%c0_44, %c0_45] : memref<1x128xf32, #tpu.memory_space<vmem>>, vector<1x128xf32>
    %180 = vector.broadcast %179 : vector<1x128xf32> to vector<8x128xf32>
    %181 = arith.addf %178, %180 : vector<8x128xf32>
    %c0_46 = arith.constant 0 : index
    %c0_47 = arith.constant 0 : index
    %182 = vector.load %arg6[%c0_46, %c0_47] : memref<8x128xf32, #tpu.memory_space<vmem>>, vector<8x128xf32>
    tpu.vector_store %arg6[%c0_46, %c0_47], %181 {strides = array<i32>} : memref<8x128xf32, #tpu.memory_space<vmem>>, vector<8x128xf32>,
    return
  }
}

</mosaic_0001>

<llo_original>
// kernel: tpu_custom_call.1
$region0: #{tpu_custom_call.1}
  #allocation0 [shape = 'u32[]', space=smem, size = 0x4, offset = 0x4, fixed_abs, tag = 'smem constant byte address 0x4 - core index']
  #allocation1 [shape = 'u32[72,128]{1,0:T(1,128)}', space=vmem, size = 0x9000, scoped, tag = 'internal scratch']
  %s0 = inlined_call_operand.vmem [shape: f32[64,4], index: 0, kind: input, shape index: {}]
  %s1 = inlined_call_operand.vmem [shape: f32[4,128], index: 1, kind: input, shape index: {}]
  %s2 = inlined_call_operand.vmem [shape: f32[32,128], index: 2, kind: input, shape index: {}]
  %s3 = inlined_call_operand.vmem [shape: f32[1,128], index: 3, kind: input, shape index: {}]
  %s4 = inlined_call_operand.vmem [shape: f32[32,128], index: 4, kind: input, shape index: {}]
  %s5 = inlined_call_operand.vmem [shape: f32[1,128], index: 5, kind: input, shape index: {}]
  %s6 = inlined_call_operand.hbm [shape: f32[8,128], index: 6, kind: output, shape index: {}]
  %s7 = sld [smem:[#allocation0]]
  $region34: #{tpu_custom_call.1} parent=0
    _
  %s9 = ssub.s32 1, %s7
  %s10 = scalar_select 0, %s9, %s7
  $region1: #{tpu_custom_call.1} parent=0
    #allocation2 [shape = 'u8[4096]{0}', space=vmem, size = 0x1000, scoped, tag = 'output window, operand 0, single buffered']
    #allocation3 [shape = 's32[1]{0}', space=sflag, size = 0x4, scoped, tag = 'scoped memory for tpu_custom_call.1']
    %11 = vsyncpa [#allocation3], 0
    // Predicated region
    $region2: #{tpu_custom_call.1} parent=1 // pred_check
      _
    $region3: #{tpu_custom_call.1} parent=1 // pred_check_branch
      %13 = sbr.rel (0) target = $region5
    $region4: #{tpu_custom_call.1} parent=1 // pred_region
      _
    $region5: #{tpu_custom_call.1} parent=1 // pred_fallthru
      _
    // Predicated region
    $region6: #{tpu_custom_call.1} parent=1 // pred_check
      _
    $region7: #{tpu_custom_call.1} parent=1 // pred_check_branch
      %15 = sbr.rel (0) target = $region9
    $region8: #{tpu_custom_call.1} parent=1 // pred_region
      _
    $region9: #{tpu_custom_call.1} parent=1 // pred_fallthru
      _
    // Predicated region
    $region10: #{tpu_custom_call.1} parent=1 // pred_check
      _
    $region11: #{tpu_custom_call.1} parent=1 // pred_check_branch
      %17 = sbr.rel (0) target = $region13
    $region12: #{tpu_custom_call.1} parent=1 // pred_region
      _
    $region13: #{tpu_custom_call.1} parent=1 // pred_fallthru
      _
    // Predicated region
    $region14: #{tpu_custom_call.1} parent=1 // pred_check
      _
    $region15: #{tpu_custom_call.1} parent=1 // pred_check_branch
      %19 = sbr.rel (0) target = $region17
    $region16: #{tpu_custom_call.1} parent=1 // pred_region
      _
    $region17: #{tpu_custom_call.1} parent=1 // pred_fallthru
      _
    // Predicated region
    $region18: #{tpu_custom_call.1} parent=1 // pred_check
      _
    $region19: #{tpu_custom_call.1} parent=1 // pred_check_branch
      %21 = sbr.rel (0) target = $region21
    $region20: #{tpu_custom_call.1} parent=1 // pred_region
      _
    $region21: #{tpu_custom_call.1} parent=1 // pred_fallthru
      _
    // Predicated region
    $region22: #{tpu_custom_call.1} parent=1 // pred_check
      _
    $region23: #{tpu_custom_call.1} parent=1 // pred_check_branch
      %23 = sbr.rel (0) target = $region25
    $region24: #{tpu_custom_call.1} parent=1 // pred_region
      _
    $region25: #{tpu_custom_call.1} parent=1 // pred_fallthru
      _
    %v24 = vld [vmem:[%s0] sm:$0xff]
    %v25 = vld [vmem:[%s0 + $0x8] sm:$0xff]
    %v26 = vld [vmem:[%s0 + $0x10] sm:$0xff]
    %v27 = vld [vmem:[%s0 + $0x18] sm:$0xff]
    %v28 = vld [vmem:[%s0 + $0x20] sm:$0xff]
    %v29 = vld [vmem:[%s0 + $0x28] sm:$0xff]
    %v30 = vld [vmem:[%s0 + $0x30] sm:$0xff]
    %v31 = vld [vmem:[%s0 + $0x38] sm:$0xff]
    %v32 = vld [vmem:[%s1] sm:$0xf]
    %v33 = vld [vmem:[%s3] sm:$0x1]
    %v35 = vperm.slane %v33, 0
    %vm37 = vcmask 31744
    %v39 = vsel %vm37, %v24, 0
    %v42 = vsel %vm37, %v25, 0
    %v45 = vsel %vm37, %v26, 0
    %v48 = vsel %vm37, %v27, 0
    %v51 = vsel %vm37, %v28, 0
    %v54 = vsel %vm37, %v29, 0
    %v57 = vsel %vm37, %v30, 0
    %v60 = vsel %vm37, %v31, 0
    %vm62 = vcmask 1043456
    %v64 = vsel %vm62, %v32, 0
    %66 = vmatpush.msra.mxu0 0.0
    %67 = vmatpush.msra.mxu0 0.0
    %68 = vmatpush.msra.mxu0 0.0
    %69 = vmatpush.msra.mxu0 0.0
    %70 = vmatpush.msra.mxu0 0.0
    %71 = vmatpush.msra.mxu0 0.0
    %72 = vmatpush.msra.mxu0 0.0
    %73 = vmatpush.msra.mxu0 0.0
    %74 = vmatpush.msra.mxu0 0.0
    %75 = vmatpush.msra.mxu0 0.0
    %76 = vmatpush.msra.mxu0 0.0
    %77 = vmatpush.msra.mxu0 0.0
    %78 = vmatpush.msra.mxu0 0.0
    %79 = vmatpush.msra.mxu0 0.0
    %80 = vmatpush.msra.mxu0 0.0
    %81 = vmatpush.msra.mxu0 %v64
    %82 = vmatmul.f32.gmra.mxu0 %v39
    %v83 = vpop.f32.mrf.mxu0
    %v84 = vadd.f32 %v35, %v83
    %85 = vmatmul.f32.gmra.mxu0 %v42
    %v86 = vpop.f32.mrf.mxu0
    %v87 = vadd.f32 %v35, %v86
    %88 = vmatmul.f32.gmra.mxu0 %v45
    %v89 = vpop.f32.mrf.mxu0
    %v90 = vadd.f32 %v35, %v89
    %91 = vmatmul.f32.gmra.mxu0 %v48
    %v92 = vpop.f32.mrf.mxu0
    %v93 = vadd.f32 %v35, %v92
    %94 = vmatmul.f32.gmra.mxu0 %v51
    %v95 = vpop.f32.mrf.mxu0
    %v96 = vadd.f32 %v35, %v95
    %97 = vmatmul.f32.gmra.mxu0 %v54
    %v98 = vpop.f32.mrf.mxu0
    %v99 = vadd.f32 %v35, %v98
    %100 = vmatmul.f32.gmra.mxu0 %v57
    %v101 = vpop.f32.mrf.mxu0
    %v102 = vadd.f32 %v35, %v101
    %103 = vmatmul.f32.gmra.mxu0 %v60
    %v104 = vpop.f32.mrf.mxu0
    %v105 = vadd.f32 %v35, %v104
    %106 = vdwg.mxu0
    %v107 = vld [vmem:[%s2] sm:$0xff]
    %v108 = vld [vmem:[%s2 + $0x8] sm:$0xff]
    %v109 = vld [vmem:[%s2 + $0x10] sm:$0xff]
    %v110 = vld [vmem:[%s2 + $0x18] sm:$0xff]
    %vm111 = vcmask 261120
    %v113 = vsel %vm111, 0.0, 0
    %115 = vmatpush.msra.mxu0 0.0
    %116 = vmatpush.msra.mxu0 0.0
    %117 = vmatpush.msra.mxu0 0.0
    %118 = vmatpush.msra.mxu0 0.0
    %119 = vmatpush.msra.mxu0 0.0
    %120 = vmatpush.msra.mxu0 0.0
    %121 = vmatpush.msra.mxu0 0.0
    %122 = vmatpush.msra.mxu0 0.0
    %123 = vmatpush.msra.mxu0 0.0
    %124 = vmatpush.msra.mxu0 0.0
    %125 = vmatpush.msra.mxu0 0.0
    %126 = vmatpush.msra.mxu0 0.0
    %127 = vmatpush.msra.mxu0 %v110
    %128 = vmatpush.msra.mxu0 %v109
    %129 = vmatpush.msra.mxu0 %v108
    %130 = vmatpush.msra.mxu0 %v107
    %131 = vmatmul.f32.gmra.mxu0 %v113
    %v132 = vpop.f32.mrf.mxu0
    %v133 = vadd.f32 0.0, %v132
    %134 = vdwg.mxu0
    %v135 = vadd.f32 %v84, %v133
    %v136 = vxor.u32 %v135, 2147483648
    %v137 = vmul.f32 %v136, 1.442695
    %v138 = vpow.pop %v137
    %v139 = vadd.f32 %v138, 1.0
    %v140 = vrcp.pop %v139
    %v141 = vmul.f32 %v139, %v140
    %v142 = vsub.f32 1.0, %v141
    %v143 = vmul.f32 %v140, %v142
    %v144 = vadd.f32 %v140, %v143
    %vm145 = vweird.f32 %v139
    %vm146 = vweird.f32 %v140
    %vm147 = vmor %vm145, %vm146
    %v148 = vsel %vm147, %v140, %v144
    %v149 = vand.u32 2147483647, %v139
    %vm150 = vcmp.eq.f32.partialorder %v149, 8.507059e+37
    %v151 = vand.u32 %v139, 2147483648
    %v152 = vor.u32 1.1754944e-38, %v151
    %v153 = vsel %vm150, %v152, %v148
    %v154 = vmul.f32 1.0, %v153
    %v155 = vmul.f32 %v154, 2.0
    %v156 = vsub.f32 %v155, 1.0
    %v157 = vmul.f32 %v154, 0.0
    %159 = vrot.lane.b32.xlu0 %v156, 64
    %v160 = vpop.permute.xlu0 %159
    %v162 = vmul.f32 %v154, %v160
    %164 = vrot.lane.b32.xlu0 %v162, 32
    %v165 = vpop.permute.xlu0 %164
    %v167 = vadd.f32 %v157, %v165
    %v168 = vtanh.pop %v167
    %170 = vrot.lane.b32.xlu0 %v168, 64
    %v171 = vpop.permute.xlu0 %170
    %v173 = vmul.f32 %v154, %v171
    %175 = vrot.lane.b32.xlu0 %v173, 32
    %v176 = vpop.permute.xlu0 %175
    %v177 = vsel %vm111, %v176, 0
    %179 = vmatpush.msra.mxu0 0.0
    %180 = vmatpush.msra.mxu0 0.0
    %181 = vmatpush.msra.mxu0 0.0
    %182 = vmatpush.msra.mxu0 0.0
    %183 = vmatpush.msra.mxu0 0.0
    %184 = vmatpush.msra.mxu0 0.0
    %185 = vmatpush.msra.mxu0 0.0
    %186 = vmatpush.msra.mxu0 0.0
    %187 = vmatpush.msra.mxu0 0.0
    %188 = vmatpush.msra.mxu0 0.0
    %189 = vmatpush.msra.mxu0 0.0
    %190 = vmatpush.msra.mxu0 0.0
    %191 = vmatpush.msra.mxu0 %v110
    %192 = vmatpush.msra.mxu0 %v109
    %193 = vmatpush.msra.mxu0 %v108
    %194 = vmatpush.msra.mxu0 %v107
    %195 = vmatmul.f32.gmra.mxu0 %v177
    %v196 = vpop.f32.mrf.mxu0
    %v197 = vadd.f32 0.0, %v196
    %198 = vdwg.mxu0
    %v199 = vadd.f32 %v87, %v197
    %v200 = vxor.u32 %v199, 2147483648
    %v201 = vmul.f32 %v200, 1.442695
    %v202 = vpow.pop %v201
    %v203 = vadd.f32 %v202, 1.0
    %v204 = vrcp.pop %v203
    %v205 = vmul.f32 %v203, %v204
    %v206 = vsub.f32 1.0, %v205
    %v207 = vmul.f32 %v204, %v206
    %v208 = vadd.f32 %v204, %v207
    %vm209 = vweird.f32 %v203
    %vm210 = vweird.f32 %v204
    %vm211 = vmor %vm209, %vm210
    %v212 = vsel %vm211, %v204, %v208
    %v213 = vand.u32 2147483647, %v203
    %vm214 = vcmp.eq.f32.partialorder %v213, 8.507059e+37
    %v215 = vand.u32 %v203, 2147483648
    %v216 = vor.u32 1.1754944e-38, %v215
    %v217 = vsel %vm214, %v216, %v212
    %v218 = vmul.f32 1.0, %v217
    %v219 = vmul.f32 %v218, 2.0
    %v220 = vsub.f32 %v219, 1.0
    %v221 = vmul.f32 %v218, %v167
    %223 = vrot.lane.b32.xlu0 %v220, 64
    %v224 = vpop.permute.xlu0 %223
    %v226 = vmul.f32 %v218, %v224
    %228 = vrot.lane.b32.xlu0 %v226, 32
    %v229 = vpop.permute.xlu0 %228
    %v231 = vadd.f32 %v221, %v229
    %v232 = vtanh.pop %v231
    %234 = vrot.lane.b32.xlu0 %v232, 64
    %v235 = vpop.permute.xlu0 %234
    %v237 = vmul.f32 %v218, %v235
    %239 = vrot.lane.b32.xlu0 %v237, 32
    %v240 = vpop.permute.xlu0 %239
    %v241 = vsel %vm111, %v240, 0
    %243 = vmatpush.msra.mxu0 0.0
    %244 = vmatpush.msra.mxu0 0.0
    %245 = vmatpush.msra.mxu0 0.0
    %246 = vmatpush.msra.mxu0 0.0
    %247 = vmatpush.msra.mxu0 0.0
    %248 = vmatpush.msra.mxu0 0.0
    %249 = vmatpush.msra.mxu0 0.0
    %250 = vmatpush.msra.mxu0 0.0
    %251 = vmatpush.msra.mxu0 0.0
    %252 = vmatpush.msra.mxu0 0.0
    %253 = vmatpush.msra.mxu0 0.0
    %254 = vmatpush.msra.mxu0 0.0
    %255 = vmatpush.msra.mxu0 %v110
    %256 = vmatpush.msra.mxu0 %v109
    %257 = vmatpush.msra.mxu0 %v108
    %258 = vmatpush.msra.mxu0 %v107
    %259 = vmatmul.f32.gmra.mxu0 %v241
    %v260 = vpop.f32.mrf.mxu0
    %v261 = vadd.f32 0.0, %v260
    %262 = vdwg.mxu0
    %v263 = vadd.f32 %v90, %v261
    %v264 = vxor.u32 %v263, 2147483648
    %v265 = vmul.f32 %v264, 1.442695
    %v266 = vpow.pop %v265
    %v267 = vadd.f32 %v266, 1.0
    %v268 = vrcp.pop %v267
    %v269 = vmul.f32 %v267, %v268
    %v270 = vsub.f32 1.0, %v269
    %v271 = vmul.f32 %v268, %v270
    %v272 = vadd.f32 %v268, %v271
    %vm273 = vweird.f32 %v267
    %vm274 = vweird.f32 %v268
    %vm275 = vmor %vm273, %vm274
    %v276 = vsel %vm275, %v268, %v272
    %v277 = vand.u32 2147483647, %v267
    %vm278 = vcmp.eq.f32.partialorder %v277, 8.507059e+37
    %v279 = vand.u32 %v267, 2147483648
    %v280 = vor.u32 1.1754944e-38, %v279
    %v281 = vsel %vm278, %v280, %v276
    %v282 = vmul.f32 1.0, %v281
    %v283 = vmul.f32 %v282, 2.0
    %v284 = vsub.f32 %v283, 1.0
    %v285 = vmul.f32 %v282, %v231
    %287 = vrot.lane.b32.xlu0 %v284, 64
    %v288 = vpop.permute.xlu0 %287
    %v290 = vmul.f32 %v282, %v288
    %292 = vrot.lane.b32.xlu0 %v290, 32
    %v293 = vpop.permute.xlu0 %292
    %v295 = vadd.f32 %v285, %v293
    %v296 = vtanh.pop %v295
    %298 = vrot.lane.b32.xlu0 %v296, 64
    %v299 = vpop.permute.xlu0 %298
    %v301 = vmul.f32 %v282, %v299
    %303 = vrot.lane.b32.xlu0 %v301, 32
    %v304 = vpop.permute.xlu0 %303
    %v305 = vsel %vm111, %v304, 0
    %307 = vmatpush.msra.mxu0 0.0
    %308 = vmatpush.msra.mxu0 0.0
    %309 = vmatpush.msra.mxu0 0.0
    %310 = vmatpush.msra.mxu0 0.0
    %311 = vmatpush.msra.mxu0 0.0
    %312 = vmatpush.msra.mxu0 0.0
    %313 = vmatpush.msra.mxu0 0.0
    %314 = vmatpush.msra.mxu0 0.0
    %315 = vmatpush.msra.mxu0 0.0
    %316 = vmatpush.msra.mxu0 0.0
    %317 = vmatpush.msra.mxu0 0.0
    %318 = vmatpush.msra.mxu0 0.0
    %319 = vmatpush.msra.mxu0 %v110
    %320 = vmatpush.msra.mxu0 %v109
    %321 = vmatpush.msra.mxu0 %v108
    %322 = vmatpush.msra.mxu0 %v107
    %323 = vmatmul.f32.gmra.mxu0 %v305
    %v324 = vpop.f32.mrf.mxu0
    %v325 = vadd.f32 0.0, %v324
    %326 = vdwg.mxu0
    %v327 = vadd.f32 %v93, %v325
    %v328 = vxor.u32 %v327, 2147483648
    %v329 = vmul.f32 %v328, 1.442695
    %v330 = vpow.pop %v329
    %v331 = vadd.f32 %v330, 1.0
    %v332 = vrcp.pop %v331
    %v333 = vmul.f32 %v331, %v332
    %v334 = vsub.f32 1.0, %v333
    %v335 = vmul.f32 %v332, %v334
    %v336 = vadd.f32 %v332, %v335
    %vm337 = vweird.f32 %v331
    %vm338 = vweird.f32 %v332
    %vm339 = vmor %vm337, %vm338
    %v340 = vsel %vm339, %v332, %v336
    %v341 = vand.u32 2147483647, %v331
    %vm342 = vcmp.eq.f32.partialorder %v341, 8.507059e+37
    %v343 = vand.u32 %v331, 2147483648
    %v344 = vor.u32 1.1754944e-38, %v343
    %v345 = vsel %vm342, %v344, %v340
    %v346 = vmul.f32 1.0, %v345
    %v347 = vmul.f32 %v346, 2.0
    %v348 = vsub.f32 %v347, 1.0
    %v349 = vmul.f32 %v346, %v295
    %351 = vrot.lane.b32.xlu0 %v348, 64
    %v352 = vpop.permute.xlu0 %351
    %v354 = vmul.f32 %v346, %v352
    %356 = vrot.lane.b32.xlu0 %v354, 32
    %v357 = vpop.permute.xlu0 %356
    %v359 = vadd.f32 %v349, %v357
    %v360 = vtanh.pop %v359
    %362 = vrot.lane.b32.xlu0 %v360, 64
    %v363 = vpop.permute.xlu0 %362
    %v365 = vmul.f32 %v346, %v363
    %367 = vrot.lane.b32.xlu0 %v365, 32
    %v368 = vpop.permute.xlu0 %367
    %v369 = vsel %vm111, %v368, 0
    %371 = vmatpush.msra.mxu0 0.0
    %372 = vmatpush.msra.mxu0 0.0
    %373 = vmatpush.msra.mxu0 0.0
    %374 = vmatpush.msra.mxu0 0.0
    %375 = vmatpush.msra.mxu0 0.0
    %376 = vmatpush.msra.mxu0 0.0
    %377 = vmatpush.msra.mxu0 0.0
    %378 = vmatpush.msra.mxu0 0.0
    %379 = vmatpush.msra.mxu0 0.0
    %380 = vmatpush.msra.mxu0 0.0
    %381 = vmatpush.msra.mxu0 0.0
    %382 = vmatpush.msra.mxu0 0.0
    %383 = vmatpush.msra.mxu0 %v110
    %384 = vmatpush.msra.mxu0 %v109
    %385 = vmatpush.msra.mxu0 %v108
    %386 = vmatpush.msra.mxu0 %v107
    %387 = vmatmul.f32.gmra.mxu0 %v369
    %v388 = vpop.f32.mrf.mxu0
    %v389 = vadd.f32 0.0, %v388
    %390 = vdwg.mxu0
    %v391 = vadd.f32 %v96, %v389
    %v392 = vxor.u32 %v391, 2147483648
    %v393 = vmul.f32 %v392, 1.442695
    %v394 = vpow.pop %v393
    %v395 = vadd.f32 %v394, 1.0
    %v396 = vrcp.pop %v395
    %v397 = vmul.f32 %v395, %v396
    %v398 = vsub.f32 1.0, %v397
    %v399 = vmul.f32 %v396, %v398
    %v400 = vadd.f32 %v396, %v399
    %vm401 = vweird.f32 %v395
    %vm402 = vweird.f32 %v396
    %vm403 = vmor %vm401, %vm402
    %v404 = vsel %vm403, %v396, %v400
    %v405 = vand.u32 2147483647, %v395
    %vm406 = vcmp.eq.f32.partialorder %v405, 8.507059e+37
    %v407 = vand.u32 %v395, 2147483648
    %v408 = vor.u32 1.1754944e-38, %v407
    %v409 = vsel %vm406, %v408, %v404
    %v410 = vmul.f32 1.0, %v409
    %v411 = vmul.f32 %v410, 2.0
    %v412 = vsub.f32 %v411, 1.0
    %v413 = vmul.f32 %v410, %v359
    %415 = vrot.lane.b32.xlu0 %v412, 64
    %v416 = vpop.permute.xlu0 %415
    %v418 = vmul.f32 %v410, %v416
    %420 = vrot.lane.b32.xlu0 %v418, 32
    %v421 = vpop.permute.xlu0 %420
    %v423 = vadd.f32 %v413, %v421
    %v424 = vtanh.pop %v423
    %426 = vrot.lane.b32.xlu0 %v424, 64
    %v427 = vpop.permute.xlu0 %426
    %v429 = vmul.f32 %v410, %v427
    %431 = vrot.lane.b32.xlu0 %v429, 32
    %v432 = vpop.permute.xlu0 %431
    %v433 = vsel %vm111, %v432, 0
    %435 = vmatpush.msra.mxu0 0.0
    %436 = vmatpush.msra.mxu0 0.0
    %437 = vmatpush.msra.mxu0 0.0
    %438 = vmatpush.msra.mxu0 0.0
    %439 = vmatpush.msra.mxu0 0.0
    %440 = vmatpush.msra.mxu0 0.0
    %441 = vmatpush.msra.mxu0 0.0
    %442 = vmatpush.msra.mxu0 0.0
    %443 = vmatpush.msra.mxu0 0.0
    %444 = vmatpush.msra.mxu0 0.0
    %445 = vmatpush.msra.mxu0 0.0
    %446 = vmatpush.msra.mxu0 0.0
    %447 = vmatpush.msra.mxu0 %v110
    %448 = vmatpush.msra.mxu0 %v109
    %449 = vmatpush.msra.mxu0 %v108
    %450 = vmatpush.msra.mxu0 %v107
    %451 = vmatmul.f32.gmra.mxu0 %v433
    %v452 = vpop.f32.mrf.mxu0
    %v453 = vadd.f32 0.0, %v452
    %454 = vdwg.mxu0
    %v455 = vadd.f32 %v99, %v453
    %v456 = vxor.u32 %v455, 2147483648
    %v457 = vmul.f32 %v456, 1.442695
    %v458 = vpow.pop %v457
    %v459 = vadd.f32 %v458, 1.0
    %v460 = vrcp.pop %v459
    %v461 = vmul.f32 %v459, %v460
    %v462 = vsub.f32 1.0, %v461
    %v463 = vmul.f32 %v460, %v462
    %v464 = vadd.f32 %v460, %v463
    %vm465 = vweird.f32 %v459
    %vm466 = vweird.f32 %v460
    %vm467 = vmor %vm465, %vm466
    %v468 = vsel %vm467, %v460, %v464
    %v469 = vand.u32 2147483647, %v459
    %vm470 = vcmp.eq.f32.partialorder %v469, 8.507059e+37
    %v471 = vand.u32 %v459, 2147483648
    %v472 = vor.u32 1.1754944e-38, %v471
    %v473 = vsel %vm470, %v472, %v468
    %v474 = vmul.f32 1.0, %v473
    %v475 = vmul.f32 %v474, 2.0
    %v476 = vsub.f32 %v475, 1.0
    %v477 = vmul.f32 %v474, %v423
    %479 = vrot.lane.b32.xlu0 %v476, 64
    %v480 = vpop.permute.xlu0 %479
    %v482 = vmul.f32 %v474, %v480
    %484 = vrot.lane.b32.xlu0 %v482, 32
    %v485 = vpop.permute.xlu0 %484
    %v487 = vadd.f32 %v477, %v485
    %v488 = vtanh.pop %v487
    %490 = vrot.lane.b32.xlu0 %v488, 64
    %v491 = vpop.permute.xlu0 %490
    %v493 = vmul.f32 %v474, %v491
    %495 = vrot.lane.b32.xlu0 %v493, 32
    %v496 = vpop.permute.xlu0 %495
    %v497 = vsel %vm111, %v496, 0
    %499 = vmatpush.msra.mxu0 0.0
    %500 = vmatpush.msra.mxu0 0.0
    %501 = vmatpush.msra.mxu0 0.0
    %502 = vmatpush.msra.mxu0 0.0
    %503 = vmatpush.msra.mxu0 0.0
    %504 = vmatpush.msra.mxu0 0.0
    %505 = vmatpush.msra.mxu0 0.0
    %506 = vmatpush.msra.mxu0 0.0
    %507 = vmatpush.msra.mxu0 0.0
    %508 = vmatpush.msra.mxu0 0.0
    %509 = vmatpush.msra.mxu0 0.0
    %510 = vmatpush.msra.mxu0 0.0
    %511 = vmatpush.msra.mxu0 %v110
    %512 = vmatpush.msra.mxu0 %v109
    %513 = vmatpush.msra.mxu0 %v108
    %514 = vmatpush.msra.mxu0 %v107
    %515 = vmatmul.f32.gmra.mxu0 %v497
    %v516 = vpop.f32.mrf.mxu0
    %v517 = vadd.f32 0.0, %v516
    %518 = vdwg.mxu0
    %v519 = vadd.f32 %v102, %v517
    %v520 = vxor.u32 %v519, 2147483648
    %v521 = vmul.f32 %v520, 1.442695
    %v522 = vpow.pop %v521
    %v523 = vadd.f32 %v522, 1.0
    %v524 = vrcp.pop %v523
    %v525 = vmul.f32 %v523, %v524
    %v526 = vsub.f32 1.0, %v525
    %v527 = vmul.f32 %v524, %v526
    %v528 = vadd.f32 %v524, %v527
    %vm529 = vweird.f32 %v523
    %vm530 = vweird.f32 %v524
    %vm531 = vmor %vm529, %vm530
    %v532 = vsel %vm531, %v524, %v528
    %v533 = vand.u32 2147483647, %v523
    %vm534 = vcmp.eq.f32.partialorder %v533, 8.507059e+37
    %v535 = vand.u32 %v523, 2147483648
    %v536 = vor.u32 1.1754944e-38, %v535
    %v537 = vsel %vm534, %v536, %v532
    %v538 = vmul.f32 1.0, %v537
    %v539 = vmul.f32 %v538, 2.0
    %v540 = vsub.f32 %v539, 1.0
    %v541 = vmul.f32 %v538, %v487
    %543 = vrot.lane.b32.xlu0 %v540, 64
    %v544 = vpop.permute.xlu0 %543
    %v546 = vmul.f32 %v538, %v544
    %548 = vrot.lane.b32.xlu0 %v546, 32
    %v549 = vpop.permute.xlu0 %548
    %v551 = vadd.f32 %v541, %v549
    %v552 = vtanh.pop %v551
    %554 = vrot.lane.b32.xlu0 %v552, 64
    %v555 = vpop.permute.xlu0 %554
    %v557 = vmul.f32 %v538, %v555
    %559 = vrot.lane.b32.xlu0 %v557, 32
    %v560 = vpop.permute.xlu0 %559
    %v561 = vsel %vm111, %v560, 0
    %563 = vmatpush.msra.mxu0 0.0
    %564 = vmatpush.msra.mxu0 0.0
    %565 = vmatpush.msra.mxu0 0.0
    %566 = vmatpush.msra.mxu0 0.0
    %567 = vmatpush.msra.mxu0 0.0
    %568 = vmatpush.msra.mxu0 0.0
    %569 = vmatpush.msra.mxu0 0.0
    %570 = vmatpush.msra.mxu0 0.0
    %571 = vmatpush.msra.mxu0 0.0
    %572 = vmatpush.msra.mxu0 0.0
    %573 = vmatpush.msra.mxu0 0.0
    %574 = vmatpush.msra.mxu0 0.0
    %575 = vmatpush.msra.mxu0 %v110
    %576 = vmatpush.msra.mxu0 %v109
    %577 = vmatpush.msra.mxu0 %v108
    %578 = vmatpush.msra.mxu0 %v107
    %579 = vmatmul.f32.gmra.mxu0 %v561
    %v580 = vpop.f32.mrf.mxu0
    %v581 = vadd.f32 0.0, %v580
    %582 = vdwg.mxu0
    %v583 = vadd.f32 %v105, %v581
    %v584 = vxor.u32 %v583, 2147483648
    %v585 = vmul.f32 %v584, 1.442695
    %v586 = vpow.pop %v585
    %v587 = vadd.f32 %v586, 1.0
    %v588 = vrcp.pop %v587
    %v589 = vmul.f32 %v587, %v588
    %v590 = vsub.f32 1.0, %v589
    %v591 = vmul.f32 %v588, %v590
    %v592 = vadd.f32 %v588, %v591
    %vm593 = vweird.f32 %v587
    %vm594 = vweird.f32 %v588
    %vm595 = vmor %vm593, %vm594
    %v596 = vsel %vm595, %v588, %v592
    %v597 = vand.u32 2147483647, %v587
    %vm598 = vcmp.eq.f32.partialorder %v597, 8.507059e+37
    %v599 = vand.u32 %v587, 2147483648
    %v600 = vor.u32 1.1754944e-38, %v599
    %v601 = vsel %vm598, %v600, %v596
    %v602 = vmul.f32 1.0, %v601
    %v603 = vmul.f32 %v602, 2.0
    %v604 = vsub.f32 %v603, 1.0
    %v605 = vmul.f32 %v602, %v551
    %607 = vrot.lane.b32.xlu0 %v604, 64
    %v608 = vpop.permute.xlu0 %607
    %v610 = vmul.f32 %v602, %v608
    %612 = vrot.lane.b32.xlu0 %v610, 32
    %v613 = vpop.permute.xlu0 %612
    %v615 = vadd.f32 %v605, %v613
    %v616 = vtanh.pop %v615
    %618 = vrot.lane.b32.xlu0 %v616, 64
    %v619 = vpop.permute.xlu0 %618
    %v621 = vmul.f32 %v602, %v619
    %v622 = vld [vmem:[%s4] sm:$0xff]
    %v623 = vld [vmem:[%s4 + $0x8] sm:$0xff]
    %v624 = vld [vmem:[%s4 + $0x10] sm:$0xff]
    %v625 = vld [vmem:[%s4 + $0x18] sm:$0xff]
    %v626 = vld [vmem:[%s5] sm:$0x1]
    %v628 = vperm.slane %v626, 0
    %631 = vrot.lane.b32.xlu0 %v621, 32
    %v632 = vpop.permute.xlu0 %631
    %v633 = vsel %vm111, %v632, 0
    %635 = vmatpush.msra.mxu0 0.0
    %636 = vmatpush.msra.mxu0 0.0
    %637 = vmatpush.msra.mxu0 0.0
    %638 = vmatpush.msra.mxu0 0.0
    %639 = vmatpush.msra.mxu0 0.0
    %640 = vmatpush.msra.mxu0 0.0
    %641 = vmatpush.msra.mxu0 0.0
    %642 = vmatpush.msra.mxu0 0.0
    %643 = vmatpush.msra.mxu0 0.0
    %644 = vmatpush.msra.mxu0 0.0
    %645 = vmatpush.msra.mxu0 0.0
    %646 = vmatpush.msra.mxu0 0.0
    %647 = vmatpush.msra.mxu0 %v625
    %648 = vmatpush.msra.mxu0 %v624
    %649 = vmatpush.msra.mxu0 %v623
    %650 = vmatpush.msra.mxu0 %v622
    %651 = vmatmul.f32.gmra.mxu0 %v633
    %v652 = vpop.f32.mrf.mxu0
    %v653 = vadd.f32 %v628, %v652
    %654 = vdwg.mxu0
    %655 = vst [vmem:[#allocation2] sm:$0xff] %v653
    // Predicated region
    $region26: #{tpu_custom_call.1} parent=1 // pred_check
      _
    $region27: #{tpu_custom_call.1} parent=1 // pred_check_branch
      %657 = sbr.rel (0) target = $region29
    $region28: #{tpu_custom_call.1} parent=1 // pred_region
      %659 = vsyncadd [#allocation3], 0
      %s661 = sshll.u32 [#allocation2], 4
      %s662 = int_to_ptr.vmem [resolvable:$true] %s661
      %s663 = sshll.u32 %s6, 4
      %s664 = int_to_ptr.hbm [resolvable:$true] %s663
      %666 = dma.vmem_to_hbm [thread:$0]  %s662, 128, %s664, [#allocation3]
    $region29: #{tpu_custom_call.1} parent=1 // pred_fallthru
      _
    // Predicated region
    $region30: #{tpu_custom_call.1} parent=1 // pred_check
      _
    $region31: #{tpu_custom_call.1} parent=1 // pred_check_branch
      %668 = sbr.rel (0) target = $region33
    $region32: #{tpu_custom_call.1} parent=1 // pred_region
      %670 = dma.done [#allocation3], 128
    $region33: #{tpu_custom_call.1} parent=1 // pred_fallthru
      _
    %671 = vsyncpa [#allocation3], 1

</llo_original>
